<compile_context>
chip_gen: v7x
topology: tpu7x:2x2x1
jax: 0.10.0
libtpu: 0.0.40
codegen_flags: <defaults>
</compile_context>

<pallas_src>
import jax
import jax.numpy as jnp
from jax import lax
from jax.experimental import pallas as pl
from jax.experimental.pallas import tpu as pltpu

_LANE = 128            # TPU lane width
_SUBLANE = 8           # f32 sublane tiling
_MAX_BATCH_TILE = 2048  # multiple of 256 (lane-dense tile, >=2 steps on v7x)


def _fc_kernel(x_ref, w_ref, b_ref, o_ref):
    # x_ref: [TB, K]     batch tile, features on lanes
    # w_ref: [Np8, K]    PyTorch Linear layout, VMEM-resident (N padded to 8)
    # b_ref: [Np8, 1]    VMEM-resident
    # o_ref: [Np8, TB]   classes on sublanes, batch lane-dense
    acc = lax.dot_general(
        w_ref[...], x_ref[...],
        dimension_numbers=(((1,), (1,)), ((), ())),   # W @ x.T on the MXU
        preferred_element_type=jnp.float32,
    )
    o_ref[...] = (acc + b_ref[...]).astype(o_ref.dtype)


def prepare_fc_params(weight, bias):
    """One-time parameter prep: pad n_classes up to a multiple of 8 (sublanes).

    weight: [n_classes, fc_ch] (PyTorch Linear layout)
    bias:   [n_classes]
    returns (w_pad [Np8, fc_ch], b_pad [Np8, 1], n_classes)
    """
    N, K = weight.shape
    n_pad = ((N + _SUBLANE - 1) // _SUBLANE) * _SUBLANE
    w_pad = jnp.zeros((n_pad, K), weight.dtype).at[:N, :].set(weight)
    b_pad = jnp.zeros((n_pad, 1), bias.dtype).at[:N, 0].set(bias)
    return w_pad, b_pad, N


def _batch_tiling(B, cap):
    """Pick (tb, b_total, needs_pad). Avoids padding x on the common paths."""
    # Small or ragged-but-modest batch: single full-size block (block == full
    # dim is always legal), no pad, one grid step.
    if B <= cap and (B % _LANE != 0 or B < 2 * _LANE):
        return B, B, False
    # Tiled path: tb must be a multiple of 128 (it is the output lane dim).
    # Aim for >= 2 grid steps so v7x's two TCs both get work.
    target = min(cap, max(_LANE, (B // 2) // _LANE * _LANE))
    tb = target
    while tb >= _LANE:
        if B % tb == 0:
            return tb, B, False
        tb -= _LANE
    # Huge ragged batch: fall back to padding (rare; costs one extra copy of x).
    tb = target
    b_total = ((B + tb - 1) // tb) * tb
    return tb, b_total, True


def shallow_convnet_classifier_forward(x, w_pad, b_pad, n_classes,
                                       *, batch_tile=_MAX_BATCH_TILE):
    """y = x @ weight.T + bias  (matches torch.nn.Linear semantics).

    x:     [B, fc_ch]
    w_pad: [Np8, fc_ch]  from prepare_fc_params
    b_pad: [Np8, 1]      from prepare_fc_params
    returns [B, n_classes]
    """
    B, K = x.shape
    n_pad = w_pad.shape[0]

    tb, b_total, needs_pad = _batch_tiling(B, batch_tile)
    x_in = jnp.pad(x, ((0, b_total - B), (0, 0))) if needs_pad else x
    grid = (b_total // tb,)

    cost = pl.CostEstimate(
        flops=2 * b_total * K * n_pad,
        transcendentals=0,
        bytes_accessed=x.dtype.itemsize * (b_total * K + n_pad * K
                                           + n_pad * b_total),
    )

    y_t = pl.pallas_call(
        _fc_kernel,
        out_shape=jax.ShapeDtypeStruct((n_pad, b_total), x.dtype),
        grid_spec=pltpu.PrefetchScalarGridSpec(
            num_scalar_prefetch=0,
            grid=grid,
            in_specs=[
                pl.BlockSpec((tb, K), lambda i: (i, 0)),       # x: pipelined over batch
                pl.BlockSpec((n_pad, K), lambda i: (0, 0)),    # weight: VMEM-resident
                pl.BlockSpec((n_pad, 1), lambda i: (0, 0)),    # bias:   VMEM-resident
            ],
            out_specs=pl.BlockSpec((n_pad, tb), lambda i: (0, i)),
        ),
        compiler_params=pltpu.CompilerParams(
            dimension_semantics=("parallel",),   # batch axis -> both TCs on v7x
            vmem_limit_bytes=32 * 1024 * 1024,
        ),
        cost_estimate=cost,
    )(x_in, w_pad, b_pad)

    # y_t is [Np8, b_total]; slice the real classes / rows and transpose back.
    return y_t[:n_classes, :B].T


if __name__ == "__main__":
    # Module config (small; forward only requires x.shape[-1] == fc_ch).
    n_classes = 4
    fc_ch = 32
    batch = 2

    key = jax.random.PRNGKey(0)
    kx, kw, kb, kx2 = jax.random.split(key, 4)

    # Deterministic parameter init (PyTorch Linear-style uniform bound).
    bound = 1.0 / (fc_ch ** 0.5)
    weight = jax.random.uniform(kw, (n_classes, fc_ch),
                                minval=-bound, maxval=bound, dtype=jnp.float32)
    bias = jax.random.uniform(kb, (n_classes,),
                              minval=-bound, maxval=bound, dtype=jnp.float32)

    # One-time parameter prep (hoisted out of the per-forward path).
    w_pad, b_pad, n_cls = prepare_fc_params(weight, bias)

    # --- small-shape check (matches the module's toy config) ---------------
    x = jax.random.normal(kx, (batch, fc_ch), dtype=jnp.float32)
    y = jax.block_until_ready(
        shallow_convnet_classifier_forward(x, w_pad, b_pad, n_cls))
    y_ref = x @ weight.T + bias
    assert y.shape == (batch, n_classes)
    assert jnp.allclose(y, y_ref, atol=1e-5, rtol=1e-5)

    # --- larger batch: exercises the tiled, pipelined, 2-grid-step path -----
    x_big = jax.random.normal(kx2, (1024, fc_ch), dtype=jnp.float32)
    y_big = jax.block_until_ready(
        shallow_convnet_classifier_forward(x_big, w_pad, b_pad, n_cls))
    y_big_ref = x_big @ weight.T + bias
    assert y_big.shape == (1024, n_classes)
    assert jnp.allclose(y_big, y_big_ref, atol=1e-5, rtol=1e-5)

    print("KERNEL_OK")
</pallas_src>

<mosaic_0001>
module attributes {stable_mosaic.version = 11 : i64} {
  func.func @_fc_kernel(%arg0: i32, %arg1: memref<2x32xf32, #tpu.memory_space<vmem>>, %arg2: memref<8x32xf32, #tpu.memory_space<vmem>>, %arg3: memref<8x1xf32, #tpu.memory_space<vmem>>, %arg4: memref<8x2xf32, #tpu.memory_space<vmem>>) attributes {dimension_semantics = [#tpu.dimension_semantics<parallel>], iteration_bounds = array<i64: 1>, scalar_prefetch = 0 : i64, scratch_operands = 0 : i64, tpu.core_type = #tpu.core_type<tc>, window_params = [{transform_indices = @transform_0, window_bounds = array<i64: 2, 32>}, {pipeline_mode = #tpu.pipeline_mode<synchronous>, transform_indices = @transform_1, window_bounds = array<i64: 8, 32>}, {pipeline_mode = #tpu.pipeline_mode<synchronous>, transform_indices = @transform_2, window_bounds = array<i64: 8, 1>}, {transform_indices = @transform_3, window_bounds = array<i64: 8, 2>}]} {
    %c0 = arith.constant 0 : index
    %c0_0 = arith.constant 0 : index
    %0 = vector.load %arg2[%c0, %c0_0] : memref<8x32xf32, #tpu.memory_space<vmem>>, vector<8x32xf32>
    %c0_1 = arith.constant 0 : index
    %c0_2 = arith.constant 0 : index
    %1 = vector.load %arg1[%c0_1, %c0_2] : memref<2x32xf32, #tpu.memory_space<vmem>>, vector<2x32xf32>
    %cst = arith.constant dense<0.000000e+00> : vector<8x2xf32>
    %2 = tpu.matmul %0, %1, %cst {dimension_numbers = #tpu.dot_dimension_numbers<[1], [1], [0], [0], [0, 0, 1, 0], [], []>} : vector<8x32xf32>, vector<2x32xf32>, vector<8x2xf32> -> vector<8x2xf32>
    %c0_3 = arith.constant 0 : index
    %c0_4 = arith.constant 0 : index
    %3 = vector.load %arg3[%c0_3, %c0_4] : memref<8x1xf32, #tpu.memory_space<vmem>>, vector<8x1xf32>
    %4 = vector.broadcast %3 : vector<8x1xf32> to vector<8x2xf32>
    %5 = arith.addf %2, %4 : vector<8x2xf32>
    %c0_5 = arith.constant 0 : index
    %c0_6 = arith.constant 0 : index
    %6 = vector.load %arg4[%c0_5, %c0_6] : memref<8x2xf32, #tpu.memory_space<vmem>>, vector<8x2xf32>
    tpu.vector_store %arg4[%c0_5, %c0_6], %5 {strides = array<i32>} : memref<8x2xf32, #tpu.memory_space<vmem>>, vector<8x2xf32>,
    return
  }
  func.func @transform_0(%arg0: i32) -> (i32, i32) {
    %c0_i32 = arith.constant 0 : i32
    %c0_i32_0 = arith.constant 0 : i32
    return %arg0, %c0_i32 : i32, i32
  }
  func.func @transform_1(%arg0: i32) -> (i32, i32) {
    %c0_i32 = arith.constant 0 : i32
    %c0_i32_0 = arith.constant 0 : i32
    %c0_i32_1 = arith.constant 0 : i32
    return %c0_i32, %c0_i32_0 : i32, i32
  }
  func.func @transform_2(%arg0: i32) -> (i32, i32) {
    %c0_i32 = arith.constant 0 : i32
    %c0_i32_0 = arith.constant 0 : i32
    %c0_i32_1 = arith.constant 0 : i32
    return %c0_i32, %c0_i32_0 : i32, i32
  }
  func.func @transform_3(%arg0: i32) -> (i32, i32) {
    %c0_i32 = arith.constant 0 : i32
    %c0_i32_0 = arith.constant 0 : i32
    return %c0_i32, %arg0 : i32, i32
  }
}

</mosaic_0001>

<llo_original>
// kernel: tpu_custom_call.1
$region0: #{tpu_custom_call.1}
  #allocation0 [shape = 'u32[]', space=smem, size = 0x4, offset = 0x4, fixed_abs, tag = 'smem constant byte address 0x4 - core index']
  #allocation1 [shape = 'u32[144,128]{1,0:T(1,128)}', space=vmem, size = 0x12000, scoped, tag = 'internal scratch']
  %s0 = inlined_call_operand.vmem [shape: f32[2,32], index: 0, kind: input, shape index: {}]
  %s1 = inlined_call_operand.vmem [shape: f32[8,32], index: 1, kind: input, shape index: {}]
  %s2 = inlined_call_operand.vmem [shape: f32[8,1], index: 2, kind: input, shape index: {}]
  %s3 = inlined_call_operand.vmem [shape: f32[8,2], index: 3, kind: output, shape index: {}]
  %s4 = sld [smem:[#allocation0]]
  $region22: #{tpu_custom_call.1} parent=0
    _
  %s6 = ssub.s32 1, %s4
  %s7 = scalar_select 0, %s6, %s4
  // Predicated region
  $region2: #{tpu_custom_call.1} parent=0 // pred_check
    _
  $region3: #{tpu_custom_call.1} parent=0 // pred_check_branch
    %9 = sbr.rel (0) target = $region5
  $region4: #{tpu_custom_call.1} parent=0 // pred_region
    _
  $region5: #{tpu_custom_call.1} parent=0 // pred_fallthru
    _
  // Predicated region
  $region6: #{tpu_custom_call.1} parent=0 // pred_check
    _
  $region7: #{tpu_custom_call.1} parent=0 // pred_check_branch
    %11 = sbr.rel (0) target = $region9
  $region8: #{tpu_custom_call.1} parent=0 // pred_region
    _
  $region9: #{tpu_custom_call.1} parent=0 // pred_fallthru
    _
  // Predicated region
  $region10: #{tpu_custom_call.1} parent=0 // pred_check
    _
  $region11: #{tpu_custom_call.1} parent=0 // pred_check_branch
    %13 = sbr.rel (0) target = $region13
  $region12: #{tpu_custom_call.1} parent=0 // pred_region
    _
  $region13: #{tpu_custom_call.1} parent=0 // pred_fallthru
    _
  %v14 = vld [vmem:[%s1] sm:$0xff]
  %v15 = vld [vmem:[%s0] sm:$0x3]
  %v16 = vld [vmem:[%s2] sm:$0xff]
  %18 = vset.pattern.permute.xlu0 0
  %19 = vperm.xlu0 %18, %v16
  %v20 = vpop.permute.xlu0 %19
  %vm22 = vcmask 261120
  %v24 = vsel %vm22, %v14, 0
  %v27 = vsel %vm22, %v15, 0
  %29 = vmatprep.subr.mxu0 0.0
  %30 = vmatpush1.xpose.msra.mxu0 %v27
  %31 = vmatprep.subr.mxu0 0.0
  %32 = vmatpush1.xpose.msra.mxu0 0.0
  %33 = vmatprep.subr.mxu0 0.0
  %34 = vmatpush1.xpose.msra.mxu0 0.0
  %35 = vmatprep.subr.mxu0 0.0
  %36 = vmatpush1.xpose.msra.mxu0 0.0
  %37 = vmatprep.subr.mxu0 0.0
  %38 = vmatpush1.xpose.msra.mxu0 0.0
  %39 = vmatprep.subr.mxu0 0.0
  %40 = vmatpush1.xpose.msra.mxu0 0.0
  %41 = vmatprep.subr.mxu0 0.0
  %42 = vmatpush1.xpose.msra.mxu0 0.0
  %43 = vmatprep.subr.mxu0 0.0
  %44 = vmatpush1.xpose.msra.mxu0 0.0
  %45 = vmatprep.subr.mxu0 0.0
  %46 = vmatpush1.xpose.msra.mxu0 0.0
  %47 = vmatprep.subr.mxu0 0.0
  %48 = vmatpush1.xpose.msra.mxu0 0.0
  %49 = vmatprep.subr.mxu0 0.0
  %50 = vmatpush1.xpose.msra.mxu0 0.0
  %51 = vmatprep.subr.mxu0 0.0
  %52 = vmatpush1.xpose.msra.mxu0 0.0
  %53 = vmatprep.subr.mxu0 0.0
  %54 = vmatpush1.xpose.msra.mxu0 0.0
  %55 = vmatprep.subr.mxu0 0.0
  %56 = vmatpush1.xpose.msra.mxu0 0.0
  %57 = vmatprep.subr.mxu0 0.0
  %58 = vmatpush1.xpose.msra.mxu0 0.0
  %59 = vmatprep.subr.mxu0 0.0
  %60 = vmatpush1.xpose.msra.mxu0 0.0
  %61 = vmatprep.subr.mxu0 0.0
  %62 = vmatpush1.xpose.msra.mxu0 0.0
  %63 = vmatprep.subr.mxu0 0.0
  %64 = vmatpush1.xpose.msra.mxu0 0.0
  %65 = vmatprep.subr.mxu0 0.0
  %66 = vmatpush1.xpose.msra.mxu0 0.0
  %67 = vmatprep.subr.mxu0 0.0
  %68 = vmatpush1.xpose.msra.mxu0 0.0
  %69 = vmatprep.subr.mxu0 0.0
  %70 = vmatpush1.xpose.msra.mxu0 0.0
  %71 = vmatprep.subr.mxu0 0.0
  %72 = vmatpush1.xpose.msra.mxu0 0.0
  %73 = vmatprep.subr.mxu0 0.0
  %74 = vmatpush1.xpose.msra.mxu0 0.0
  %75 = vmatprep.subr.mxu0 0.0
  %76 = vmatpush1.xpose.msra.mxu0 0.0
  %77 = vmatprep.subr.mxu0 0.0
  %78 = vmatpush1.xpose.msra.mxu0 0.0
  %79 = vmatprep.subr.mxu0 0.0
  %80 = vmatpush1.xpose.msra.mxu0 0.0
  %81 = vmatprep.subr.mxu0 0.0
  %82 = vmatpush1.xpose.msra.mxu0 0.0
  %83 = vmatprep.subr.mxu0 0.0
  %84 = vmatpush1.xpose.msra.mxu0 0.0
  %85 = vmatprep.subr.mxu0 0.0
  %86 = vmatpush1.xpose.msra.mxu0 0.0
  %87 = vmatprep.subr.mxu0 0.0
  %88 = vmatpush1.xpose.msra.mxu0 0.0
  %89 = vmatprep.subr.mxu0 0.0
  %90 = vmatpush1.xpose.msra.mxu0 0.0
  %91 = vmatprep.subr.mxu0 0.0
  %92 = vmatpush1.xpose.msra.mxu0 0.0
  %93 = vmatprep.mubr.f32.mxu0 0.0
  %94 = vmatmul.mubr.f32.gmra.mrb[0].mxu0 %v24
  %v95 = vpop.f32.mrb[0].mxu0
  %v96 = vadd.f32 %v20, %v95
  %v97 = vpop.f32.mrb[0].mxu0
  %98 = vdwg.mxu0
  %vm99 = vcmask 15360
  %100 = vst.msk [vmem:[%s3] sm:$0xff] %vm99, %v96
  // Predicated region
  $region14: #{tpu_custom_call.1} parent=0 // pred_check
    _
  $region15: #{tpu_custom_call.1} parent=0 // pred_check_branch
    %102 = sbr.rel (0) target = $region17
  $region16: #{tpu_custom_call.1} parent=0 // pred_region
    _
  $region17: #{tpu_custom_call.1} parent=0 // pred_fallthru
    _
  // Predicated region
  $region18: #{tpu_custom_call.1} parent=0 // pred_check
    _
  $region19: #{tpu_custom_call.1} parent=0 // pred_check_branch
    %104 = sbr.rel (0) target = $region21
  $region20: #{tpu_custom_call.1} parent=0 // pred_region
    _
  $region21: #{tpu_custom_call.1} parent=0 // pred_fallthru
    _

</llo_original>
